<compile_context>
chip_gen: v7x
topology: tpu7x:2x2x1
jax: 0.10.0
libtpu: 0.0.40
codegen_flags: <defaults>
</compile_context>

<pallas_src>
import jax
import jax.numpy as jnp
from jax.experimental import pallas as pl
from jax.experimental.pallas import tpu as pltpu

ZI = 16  # zi_features_num in the PyTorch module


def _round_up(n, m):
    return ((n + m - 1) // m) * m


def mlp_kernel(xt_ref,
               w1_ref, b1_ref, w2_ref, b2_ref,
               wp1_ref, bp1_ref, wp2_ref, bp2_ref, wp3_ref, bp3_ref,
               o_ref):
    """One batch tile, feature-major: xt (din, TB) -> o (1, TB)."""
    mxu_dtype = w1_ref.dtype  # MXU operand dtype (bf16 by default, f32 optional)

    def dense(w_ref, h_t, b_ref):
        # f32 accumulation, f32 bias + ReLU (v5e-safe), bf16 spill of the result.
        y = jnp.dot(w_ref[...], h_t, preferred_element_type=jnp.float32) + b_ref[...]
        return jnp.maximum(y, 0.0).astype(mxu_dtype)

    h = dense(w1_ref, xt_ref[...], b1_ref)   # (96, TB): [z-branch ; i-branch] layer 1
    h = dense(w2_ref, h, b2_ref)             # (32, TB): rows == cat([z, i], 1).T
    h = dense(wp1_ref, h, bp1_ref)           # (32, TB)
    h = dense(wp2_ref, h, bp2_ref)           # (16, TB)
    # Final Linear(16, 1): already lane-dense in feature-major form, no transpose.
    out_t = jnp.dot(wp3_ref[...], h, preferred_element_type=jnp.float32) + bp3_ref[...]
    o_ref[...] = out_t.astype(o_ref.dtype)   # (1, TB) unmasked lane-dense store


def fuse_params(params, z_dim, i_dim, mxu_dtype=jnp.bfloat16):
    """Fold the two branches into block-diagonal (out, in) weights; biases f32 (out, 1)."""
    (wz1, bz1, wz2, bz2, wi1, bi1, wi2, bi2,
     wp1, bp1, wp2, bp2, wp3, bp3) = params
    din = z_dim + i_dim
    # Layer 1 of both branches as one matmul: W1 @ x^T == [wz1 @ Z^T ; wi1 @ I^T].
    w1 = jnp.zeros((32 + 64, din), jnp.float32)
    w1 = w1.at[:32, :z_dim].set(wz1).at[32:, z_dim:].set(wi1)
    b1 = jnp.concatenate([bz1, bi1])[:, None]          # (96, 1)
    # Layer 2: rows 0:16 = z_features, 16:32 = i_features (== torch.cat order).
    w2 = jnp.zeros((2 * ZI, 32 + 64), jnp.float32)
    w2 = w2.at[:ZI, :32].set(wz2).at[ZI:, 32:].set(wi2)
    b2 = jnp.concatenate([bz2, bi2])[:, None]          # (32, 1)

    weights = [w1, w2, wp1, wp2, wp3]
    biases = [b1, b2, bp1[:, None], bp2[:, None], bp3[:, None]]
    fused = []
    for w, b in zip(weights, biases):
        fused += [w.astype(mxu_dtype), b.astype(jnp.float32)]
    return tuple(fused)


def mlp_forward(x, params, z_dim, *, block_b=8192, mxu_dtype=jnp.bfloat16):
    """x: (B, z_dim + i_dim) float32; params: flat tuple of PyTorch-layout (W, b)."""
    B, din = x.shape
    fused = fuse_params(params, z_dim, din - z_dim, mxu_dtype=mxu_dtype)

    # Tile sizing: lane-aligned (multiple of 128); force >= 2 grid steps when the
    # batch allows so v7x megacore sharding kicks in, while minimizing padding.
    b128 = _round_up(B, 128)
    tb_max = min(_round_up(block_b, 128), b128)
    n_tiles = pl.cdiv(b128, tb_max)
    if B > 128:
        n_tiles = max(n_tiles, 2)
    tb = _round_up(pl.cdiv(b128, n_tiles), 128)
    b_pad = tb * n_tiles

    x = x.astype(mxu_dtype)
    if b_pad != B:
        x = jnp.pad(x, ((0, b_pad - B), (0, 0)))
    x_t = x.T  # (din, b_pad): feature-major, batch on the lane axis

    in_specs = [pl.BlockSpec((din, tb), lambda i: (0, i))]
    # Weights/biases: full-array blocks with constant index_map -> DMA'd once,
    # VMEM-resident across all grid steps.
    for p in fused:
        in_specs.append(pl.BlockSpec(p.shape, lambda i: (0, 0)))

    flops_per_col = 2 * (din * 96 + 96 * 32 + 32 * 32 + 32 * 16 + 16 * 1)
    bytes_params = sum(int(p.size) * p.dtype.itemsize for p in fused)
    cost = pl.CostEstimate(
        flops=int(b_pad) * flops_per_col,
        transcendentals=0,
        bytes_accessed=int(x_t.size) * x_t.dtype.itemsize + int(b_pad) * 4 + bytes_params)

    # TODO(synk): if profiling shows vld/vst-bound after the bf16+transpose change,
    # add an inner unrolled loop over 256-512-lane batch sub-chunks.
    out = pl.pallas_call(
        mlp_kernel,
        out_shape=jax.ShapeDtypeStruct((1, b_pad), jnp.float32),
        grid=(n_tiles,),
        in_specs=in_specs,
        out_specs=pl.BlockSpec((1, tb), lambda i: (0, i)),
        compiler_params=pltpu.CompilerParams(
            dimension_semantics=("parallel",)),
        cost_estimate=cost,
    )(x_t, *fused)
    return out.reshape(b_pad, 1)[:B]


def init_params(key, z_dim, i_dim):
    """Deterministic PyTorch-style init. Weights (out, in); biases (out,)."""
    layer_dims = [
        (32, z_dim), (ZI, 32),            # extract_z_features
        (64, i_dim), (ZI, 64),            # extract_i_features
        (32, 2 * ZI), (16, 32), (1, 16),  # predict_revenue
    ]
    params = []
    for (dout, din) in layer_dims:
        key, kw, kb = jax.random.split(key, 3)
        bound = 1.0 / jnp.sqrt(din)
        W = jax.random.uniform(kw, (dout, din), jnp.float32, -bound, bound)
        b = jax.random.uniform(kb, (dout,), jnp.float32, -bound, bound)
        params += [W, b]
    return tuple(params)


def reference_forward(x, params, z_dim):
    (wz1, bz1, wz2, bz2, wi1, bi1, wi2, bi2,
     wp1, bp1, wp2, bp2, wp3, bp3) = params
    Z, I = x[:, :z_dim], x[:, z_dim:]
    zf = jax.nn.relu(jax.nn.relu(Z @ wz1.T + bz1) @ wz2.T + bz2)
    ifeat = jax.nn.relu(jax.nn.relu(I @ wi1.T + bi1) @ wi2.T + bi2)
    zi = jnp.concatenate([zf, ifeat], axis=1)
    h = jax.nn.relu(zi @ wp1.T + bp1)
    h = jax.nn.relu(h @ wp2.T + bp2)
    return h @ wp3.T + bp3


if __name__ == "__main__":
    z_dim, i_dim = 4, 12
    key = jax.random.PRNGKey(0)
    key, kp = jax.random.split(key)
    params = init_params(kp, z_dim, i_dim)

    # Small single-tile smoke test, f32 MXU path (PyTorch-matching numerics).
    batch = 8
    key, kx = jax.random.split(key)
    x_small = jax.random.normal(kx, (batch, z_dim + i_dim), jnp.float32)
    out = mlp_forward(x_small, params, z_dim, mxu_dtype=jnp.float32)
    jax.block_until_ready(out)
    ref = reference_forward(x_small, params, z_dim)
    assert out.shape == (batch, 1)
    assert jnp.allclose(out, ref, atol=1e-5, rtol=1e-5)

    # Multi-tile grid test (padding + 3 pipelined batch tiles), f32 path.
    batch2 = 300
    key, kx2 = jax.random.split(key)
    x_big = jax.random.normal(kx2, (batch2, z_dim + i_dim), jnp.float32)
    ref2 = reference_forward(x_big, params, z_dim)
    out2 = mlp_forward(x_big, params, z_dim, block_b=128, mxu_dtype=jnp.float32)
    jax.block_until_ready(out2)
    assert out2.shape == (batch2, 1)
    assert jnp.allclose(out2, ref2, atol=1e-5, rtol=1e-5)

    # Default high-performance path: bf16 MXU operands, feature-major tiles,
    # automatic >=2-tile split (v7x megacore), f32 accumulation.
    out_bf16 = mlp_forward(x_big, params, z_dim)
    jax.block_until_ready(out_bf16)
    assert out_bf16.shape == (batch2, 1)
    assert float(jnp.max(jnp.abs(out_bf16 - ref2))) < 0.25

    print("KERNEL_OK")
</pallas_src>

<mosaic_0001>
module attributes {stable_mosaic.version = 11 : i64} {
  func.func @mlp_kernel(%arg0: i32, %arg1: memref<16x128xf32, #tpu.memory_space<vmem>>, %arg2: memref<96x16xf32, #tpu.memory_space<vmem>>, %arg3: memref<96x1xf32, #tpu.memory_space<vmem>>, %arg4: memref<32x96xf32, #tpu.memory_space<vmem>>, %arg5: memref<32x1xf32, #tpu.memory_space<vmem>>, %arg6: memref<32x32xf32, #tpu.memory_space<vmem>>, %arg7: memref<32x1xf32, #tpu.memory_space<vmem>>, %arg8: memref<16x32xf32, #tpu.memory_space<vmem>>, %arg9: memref<16x1xf32, #tpu.memory_space<vmem>>, %arg10: memref<1x16xf32, #tpu.memory_space<vmem>>, %arg11: memref<1x1xf32, #tpu.memory_space<vmem>>, %arg12: memref<1x128xf32, #tpu.memory_space<vmem>>) attributes {dimension_semantics = [#tpu.dimension_semantics<parallel>], iteration_bounds = array<i64: 1>, scalar_prefetch = 0 : i64, scratch_operands = 0 : i64, tpu.core_type = #tpu.core_type<tc>, window_params = [{transform_indices = @transform_0, window_bounds = array<i64: 16, 128>}, {pipeline_mode = #tpu.pipeline_mode<synchronous>, transform_indices = @transform_1, window_bounds = array<i64: 96, 16>}, {pipeline_mode = #tpu.pipeline_mode<synchronous>, transform_indices = @transform_2, window_bounds = array<i64: 96, 1>}, {pipeline_mode = #tpu.pipeline_mode<synchronous>, transform_indices = @transform_3, window_bounds = array<i64: 32, 96>}, {pipeline_mode = #tpu.pipeline_mode<synchronous>, transform_indices = @transform_4, window_bounds = array<i64: 32, 1>}, {pipeline_mode = #tpu.pipeline_mode<synchronous>, transform_indices = @transform_5, window_bounds = array<i64: 32, 32>}, {pipeline_mode = #tpu.pipeline_mode<synchronous>, transform_indices = @transform_6, window_bounds = array<i64: 32, 1>}, {pipeline_mode = #tpu.pipeline_mode<synchronous>, transform_indices = @transform_7, window_bounds = array<i64: 16, 32>}, {pipeline_mode = #tpu.pipeline_mode<synchronous>, transform_indices = @transform_8, window_bounds = array<i64: 16, 1>}, {pipeline_mode = #tpu.pipeline_mode<synchronous>, transform_indices = @transform_9, window_bounds = array<i64: 1, 16>}, {pipeline_mode = #tpu.pipeline_mode<synchronous>, transform_indices = @transform_10, window_bounds = array<i64: 1, 1>}, {transform_indices = @transform_11, window_bounds = array<i64: 1, 128>}]} {
    %c0 = arith.constant 0 : index
    %c0_0 = arith.constant 0 : index
    %0 = vector.load %arg1[%c0, %c0_0] : memref<16x128xf32, #tpu.memory_space<vmem>>, vector<16x128xf32>
    %c0_1 = arith.constant 0 : index
    %c0_2 = arith.constant 0 : index
    %1 = vector.load %arg2[%c0_1, %c0_2] : memref<96x16xf32, #tpu.memory_space<vmem>>, vector<96x16xf32>
    %cst = arith.constant dense<0.000000e+00> : vector<96x128xf32>
    %2 = tpu.matmul %1, %0, %cst {dimension_numbers = #tpu.dot_dimension_numbers<[1], [0], [0], [1], [0, 0, 1, 1], [], []>} : vector<96x16xf32>, vector<16x128xf32>, vector<96x128xf32> -> vector<96x128xf32>
    %c0_3 = arith.constant 0 : index
    %c0_4 = arith.constant 0 : index
    %3 = vector.load %arg3[%c0_3, %c0_4] : memref<96x1xf32, #tpu.memory_space<vmem>>, vector<96x1xf32>
    %4 = vector.broadcast %3 : vector<96x1xf32> to vector<96x128xf32>
    %5 = arith.addf %2, %4 : vector<96x128xf32>
    %cst_5 = arith.constant 0.000000e+00 : f32
    %6 = vector.broadcast %cst_5 : f32 to vector<96x128xf32>
    %7 = arith.maximumf %5, %6 : vector<96x128xf32>
    %c0_6 = arith.constant 0 : index
    %c0_7 = arith.constant 0 : index
    %8 = vector.load %arg4[%c0_6, %c0_7] : memref<32x96xf32, #tpu.memory_space<vmem>>, vector<32x96xf32>
    %cst_8 = arith.constant dense<0.000000e+00> : vector<32x128xf32>
    %9 = tpu.matmul %8, %7, %cst_8 {dimension_numbers = #tpu.dot_dimension_numbers<[1], [0], [0], [1], [0, 0, 1, 1], [], []>} : vector<32x96xf32>, vector<96x128xf32>, vector<32x128xf32> -> vector<32x128xf32>
    %c0_9 = arith.constant 0 : index
    %c0_10 = arith.constant 0 : index
    %10 = vector.load %arg5[%c0_9, %c0_10] : memref<32x1xf32, #tpu.memory_space<vmem>>, vector<32x1xf32>
    %11 = vector.broadcast %10 : vector<32x1xf32> to vector<32x128xf32>
    %12 = arith.addf %9, %11 : vector<32x128xf32>
    %cst_11 = arith.constant 0.000000e+00 : f32
    %13 = vector.broadcast %cst_11 : f32 to vector<32x128xf32>
    %14 = arith.maximumf %12, %13 : vector<32x128xf32>
    %c0_12 = arith.constant 0 : index
    %c0_13 = arith.constant 0 : index
    %15 = vector.load %arg6[%c0_12, %c0_13] : memref<32x32xf32, #tpu.memory_space<vmem>>, vector<32x32xf32>
    %cst_14 = arith.constant dense<0.000000e+00> : vector<32x128xf32>
    %16 = tpu.matmul %15, %14, %cst_14 {dimension_numbers = #tpu.dot_dimension_numbers<[1], [0], [0], [1], [0, 0, 1, 1], [], []>} : vector<32x32xf32>, vector<32x128xf32>, vector<32x128xf32> -> vector<32x128xf32>
    %c0_15 = arith.constant 0 : index
    %c0_16 = arith.constant 0 : index
    %17 = vector.load %arg7[%c0_15, %c0_16] : memref<32x1xf32, #tpu.memory_space<vmem>>, vector<32x1xf32>
    %18 = vector.broadcast %17 : vector<32x1xf32> to vector<32x128xf32>
    %19 = arith.addf %16, %18 : vector<32x128xf32>
    %cst_17 = arith.constant 0.000000e+00 : f32
    %20 = vector.broadcast %cst_17 : f32 to vector<32x128xf32>
    %21 = arith.maximumf %19, %20 : vector<32x128xf32>
    %c0_18 = arith.constant 0 : index
    %c0_19 = arith.constant 0 : index
    %22 = vector.load %arg8[%c0_18, %c0_19] : memref<16x32xf32, #tpu.memory_space<vmem>>, vector<16x32xf32>
    %cst_20 = arith.constant dense<0.000000e+00> : vector<16x128xf32>
    %23 = tpu.matmul %22, %21, %cst_20 {dimension_numbers = #tpu.dot_dimension_numbers<[1], [0], [0], [1], [0, 0, 1, 1], [], []>} : vector<16x32xf32>, vector<32x128xf32>, vector<16x128xf32> -> vector<16x128xf32>
    %c0_21 = arith.constant 0 : index
    %c0_22 = arith.constant 0 : index
    %24 = vector.load %arg9[%c0_21, %c0_22] : memref<16x1xf32, #tpu.memory_space<vmem>>, vector<16x1xf32>
    %25 = vector.broadcast %24 : vector<16x1xf32> to vector<16x128xf32>
    %26 = arith.addf %23, %25 : vector<16x128xf32>
    %cst_23 = arith.constant 0.000000e+00 : f32
    %27 = vector.broadcast %cst_23 : f32 to vector<16x128xf32>
    %28 = arith.maximumf %26, %27 : vector<16x128xf32>
    %c0_24 = arith.constant 0 : index
    %c0_25 = arith.constant 0 : index
    %29 = vector.load %arg10[%c0_24, %c0_25] : memref<1x16xf32, #tpu.memory_space<vmem>>, vector<1x16xf32>
    %cst_26 = arith.constant dense<0.000000e+00> : vector<1x128xf32>
    %30 = tpu.matmul %29, %28, %cst_26 {dimension_numbers = #tpu.dot_dimension_numbers<[1], [0], [0], [1], [0, 0, 1, 1], [], []>} : vector<1x16xf32>, vector<16x128xf32>, vector<1x128xf32> -> vector<1x128xf32>
    %c0_27 = arith.constant 0 : index
    %c0_28 = arith.constant 0 : index
    %31 = vector.load %arg11[%c0_27, %c0_28] : memref<1x1xf32, #tpu.memory_space<vmem>>, vector<1x1xf32>
    %32 = vector.broadcast %31 : vector<1x1xf32> to vector<1x128xf32>
    %33 = arith.addf %30, %32 : vector<1x128xf32>
    %c0_29 = arith.constant 0 : index
    %c0_30 = arith.constant 0 : index
    %34 = vector.load %arg12[%c0_29, %c0_30] : memref<1x128xf32, #tpu.memory_space<vmem>>, vector<1x128xf32>
    tpu.vector_store %arg12[%c0_29, %c0_30], %33 {strides = array<i32>} : memref<1x128xf32, #tpu.memory_space<vmem>>, vector<1x128xf32>,
    return
  }
  func.func @transform_0(%arg0: i32) -> (i32, i32) {
    %c0_i32 = arith.constant 0 : i32
    %c0_i32_0 = arith.constant 0 : i32
    return %c0_i32, %arg0 : i32, i32
  }
  func.func @transform_1(%arg0: i32) -> (i32, i32) {
    %c0_i32 = arith.constant 0 : i32
    %c0_i32_0 = arith.constant 0 : i32
    %c0_i32_1 = arith.constant 0 : i32
    return %c0_i32, %c0_i32_0 : i32, i32
  }
  func.func @transform_2(%arg0: i32) -> (i32, i32) {
    %c0_i32 = arith.constant 0 : i32
    %c0_i32_0 = arith.constant 0 : i32
    %c0_i32_1 = arith.constant 0 : i32
    return %c0_i32, %c0_i32_0 : i32, i32
  }
  func.func @transform_3(%arg0: i32) -> (i32, i32) {
    %c0_i32 = arith.constant 0 : i32
    %c0_i32_0 = arith.constant 0 : i32
    %c0_i32_1 = arith.constant 0 : i32
    return %c0_i32, %c0_i32_0 : i32, i32
  }
  func.func @transform_4(%arg0: i32) -> (i32, i32) {
    %c0_i32 = arith.constant 0 : i32
    %c0_i32_0 = arith.constant 0 : i32
    %c0_i32_1 = arith.constant 0 : i32
    return %c0_i32, %c0_i32_0 : i32, i32
  }
  func.func @transform_5(%arg0: i32) -> (i32, i32) {
    %c0_i32 = arith.constant 0 : i32
    %c0_i32_0 = arith.constant 0 : i32
    %c0_i32_1 = arith.constant 0 : i32
    return %c0_i32, %c0_i32_0 : i32, i32
  }
  func.func @transform_6(%arg0: i32) -> (i32, i32) {
    %c0_i32 = arith.constant 0 : i32
    %c0_i32_0 = arith.constant 0 : i32
    %c0_i32_1 = arith.constant 0 : i32
    return %c0_i32, %c0_i32_0 : i32, i32
  }
  func.func @transform_7(%arg0: i32) -> (i32, i32) {
    %c0_i32 = arith.constant 0 : i32
    %c0_i32_0 = arith.constant 0 : i32
    %c0_i32_1 = arith.constant 0 : i32
    return %c0_i32, %c0_i32_0 : i32, i32
  }
  func.func @transform_8(%arg0: i32) -> (i32, i32) {
    %c0_i32 = arith.constant 0 : i32
    %c0_i32_0 = arith.constant 0 : i32
    %c0_i32_1 = arith.constant 0 : i32
    return %c0_i32, %c0_i32_0 : i32, i32
  }
  func.func @transform_9(%arg0: i32) -> (i32, i32) {
    %c0_i32 = arith.constant 0 : i32
    %c0_i32_0 = arith.constant 0 : i32
    %c0_i32_1 = arith.constant 0 : i32
    return %c0_i32, %c0_i32_0 : i32, i32
  }
  func.func @transform_10(%arg0: i32) -> (i32, i32) {
    %c0_i32 = arith.constant 0 : i32
    %c0_i32_0 = arith.constant 0 : i32
    %c0_i32_1 = arith.constant 0 : i32
    return %c0_i32, %c0_i32_0 : i32, i32
  }
  func.func @transform_11(%arg0: i32) -> (i32, i32) {
    %c0_i32 = arith.constant 0 : i32
    %c0_i32_0 = arith.constant 0 : i32
    return %c0_i32, %arg0 : i32, i32
  }
}

</mosaic_0001>

<llo_original>
// kernel: tpu_custom_call.1
$region0: #{tpu_custom_call.1}
  #allocation0 [shape = 'u32[]', space=smem, size = 0x4, offset = 0x4, fixed_abs, tag = 'smem constant byte address 0x4 - core index']
  #allocation1 [shape = 'u32[144,128]{1,0:T(1,128)}', space=vmem, size = 0x12000, scoped, tag = 'internal scratch']
  #allocation2 [shape = 'f32[1,1]{1,0:T(1,128)S(1)}', space=vmem, size = 0x200, scoped, tag = 'scoped memory for tpu_custom_call.1']
  %s0 = inlined_call_operand.vmem [shape: f32[16,128], index: 0, kind: input, shape index: {}]
  %s1 = inlined_call_operand.vmem [shape: f32[96,16], index: 1, kind: input, shape index: {}]
  %s2 = inlined_call_operand.vmem [shape: f32[96,1], index: 2, kind: input, shape index: {}]
  %s3 = inlined_call_operand.vmem [shape: f32[32,96], index: 3, kind: input, shape index: {}]
  %s4 = inlined_call_operand.vmem [shape: f32[32,1], index: 4, kind: input, shape index: {}]
  %s5 = inlined_call_operand.vmem [shape: f32[32,32], index: 5, kind: input, shape index: {}]
  %s6 = inlined_call_operand.vmem [shape: f32[32,1], index: 6, kind: input, shape index: {}]
  %s7 = inlined_call_operand.vmem [shape: f32[16,32], index: 7, kind: input, shape index: {}]
  %s8 = inlined_call_operand.vmem [shape: f32[16,1], index: 8, kind: input, shape index: {}]
  %s9 = inlined_call_operand.vmem [shape: f32[1,16], index: 9, kind: input, shape index: {}]
  %s10 = inlined_call_operand.<no memory space> [shape: f32[1,1], index: 10, kind: input, shape index: {}]
  %s11 = inlined_call_operand.hbm [shape: f32[1,128], index: 11, kind: output, shape index: {}]
  %s12 = sld [smem:[#allocation0]]
  $region54: #{tpu_custom_call.1} parent=0
    _
  %s14 = ssub.s32 1, %s12
  %s15 = scalar_select 0, %s14, %s12
  %v16 = vstv %s10
  %17 = vst [vmem:[#allocation2] sm:$0x1] %v16
  $region1: #{tpu_custom_call.1} parent=0
    #allocation3 [shape = 'u8[512]{0}', space=vmem, size = 0x400, scoped, tag = 'output window, operand 0, single buffered']
    #allocation4 [shape = 's32[1]{0}', space=sflag, size = 0x4, scoped, tag = 'scoped memory for tpu_custom_call.1']
    %18 = vsyncpa [#allocation4], 0
    // Predicated region
    $region2: #{tpu_custom_call.1} parent=1 // pred_check
      _
    $region3: #{tpu_custom_call.1} parent=1 // pred_check_branch
      %20 = sbr.rel (0) target = $region5
    $region4: #{tpu_custom_call.1} parent=1 // pred_region
      _
    $region5: #{tpu_custom_call.1} parent=1 // pred_fallthru
      _
    // Predicated region
    $region6: #{tpu_custom_call.1} parent=1 // pred_check
      _
    $region7: #{tpu_custom_call.1} parent=1 // pred_check_branch
      %22 = sbr.rel (0) target = $region9
    $region8: #{tpu_custom_call.1} parent=1 // pred_region
      _
    $region9: #{tpu_custom_call.1} parent=1 // pred_fallthru
      _
    // Predicated region
    $region10: #{tpu_custom_call.1} parent=1 // pred_check
      _
    $region11: #{tpu_custom_call.1} parent=1 // pred_check_branch
      %24 = sbr.rel (0) target = $region13
    $region12: #{tpu_custom_call.1} parent=1 // pred_region
      _
    $region13: #{tpu_custom_call.1} parent=1 // pred_fallthru
      _
    // Predicated region
    $region14: #{tpu_custom_call.1} parent=1 // pred_check
      _
    $region15: #{tpu_custom_call.1} parent=1 // pred_check_branch
      %26 = sbr.rel (0) target = $region17
    $region16: #{tpu_custom_call.1} parent=1 // pred_region
      _
    $region17: #{tpu_custom_call.1} parent=1 // pred_fallthru
      _
    // Predicated region
    $region18: #{tpu_custom_call.1} parent=1 // pred_check
      _
    $region19: #{tpu_custom_call.1} parent=1 // pred_check_branch
      %28 = sbr.rel (0) target = $region21
    $region20: #{tpu_custom_call.1} parent=1 // pred_region
      _
    $region21: #{tpu_custom_call.1} parent=1 // pred_fallthru
      _
    // Predicated region
    $region22: #{tpu_custom_call.1} parent=1 // pred_check
      _
    $region23: #{tpu_custom_call.1} parent=1 // pred_check_branch
      %30 = sbr.rel (0) target = $region25
    $region24: #{tpu_custom_call.1} parent=1 // pred_region
      _
    $region25: #{tpu_custom_call.1} parent=1 // pred_fallthru
      _
    // Predicated region
    $region26: #{tpu_custom_call.1} parent=1 // pred_check
      _
    $region27: #{tpu_custom_call.1} parent=1 // pred_check_branch
      %32 = sbr.rel (0) target = $region29
    $region28: #{tpu_custom_call.1} parent=1 // pred_region
      _
    $region29: #{tpu_custom_call.1} parent=1 // pred_fallthru
      _
    // Predicated region
    $region30: #{tpu_custom_call.1} parent=1 // pred_check
      _
    $region31: #{tpu_custom_call.1} parent=1 // pred_check_branch
      %34 = sbr.rel (0) target = $region33
    $region32: #{tpu_custom_call.1} parent=1 // pred_region
      _
    $region33: #{tpu_custom_call.1} parent=1 // pred_fallthru
      _
    // Predicated region
    $region34: #{tpu_custom_call.1} parent=1 // pred_check
      _
    $region35: #{tpu_custom_call.1} parent=1 // pred_check_branch
      %36 = sbr.rel (0) target = $region37
    $region36: #{tpu_custom_call.1} parent=1 // pred_region
      _
    $region37: #{tpu_custom_call.1} parent=1 // pred_fallthru
      _
    // Predicated region
    $region38: #{tpu_custom_call.1} parent=1 // pred_check
      _
    $region39: #{tpu_custom_call.1} parent=1 // pred_check_branch
      %38 = sbr.rel (0) target = $region41
    $region40: #{tpu_custom_call.1} parent=1 // pred_region
      _
    $region41: #{tpu_custom_call.1} parent=1 // pred_fallthru
      _
    // Predicated region
    $region42: #{tpu_custom_call.1} parent=1 // pred_check
      _
    $region43: #{tpu_custom_call.1} parent=1 // pred_check_branch
      %40 = sbr.rel (0) target = $region45
    $region44: #{tpu_custom_call.1} parent=1 // pred_region
      _
    $region45: #{tpu_custom_call.1} parent=1 // pred_fallthru
      _
    %v41 = vld [vmem:[%s0] sm:$0xff]
    %v42 = vld [vmem:[%s0 + $0x8] sm:$0xff]
    %v43 = vld [vmem:[%s1] sm:$0xff]
    %v44 = vld [vmem:[%s1 + $0x8] sm:$0xff]
    %v45 = vld [vmem:[%s1 + $0x10] sm:$0xff]
    %v46 = vld [vmem:[%s1 + $0x18] sm:$0xff]
    %v47 = vld [vmem:[%s1 + $0x20] sm:$0xff]
    %v48 = vld [vmem:[%s1 + $0x28] sm:$0xff]
    %v49 = vld [vmem:[%s1 + $0x30] sm:$0xff]
    %v50 = vld [vmem:[%s1 + $0x38] sm:$0xff]
    %v51 = vld [vmem:[%s1 + $0x40] sm:$0xff]
    %v52 = vld [vmem:[%s1 + $0x48] sm:$0xff]
    %v53 = vld [vmem:[%s1 + $0x50] sm:$0xff]
    %v54 = vld [vmem:[%s1 + $0x58] sm:$0xff]
    %v55 = vld [vmem:[%s2] sm:$0xff]
    %v56 = vld [vmem:[%s2 + $0x8] sm:$0xff]
    %v57 = vld [vmem:[%s2 + $0x10] sm:$0xff]
    %v58 = vld [vmem:[%s2 + $0x18] sm:$0xff]
    %v59 = vld [vmem:[%s2 + $0x20] sm:$0xff]
    %v60 = vld [vmem:[%s2 + $0x28] sm:$0xff]
    %v61 = vld [vmem:[%s2 + $0x30] sm:$0xff]
    %v62 = vld [vmem:[%s2 + $0x38] sm:$0xff]
    %v63 = vld [vmem:[%s2 + $0x40] sm:$0xff]
    %v64 = vld [vmem:[%s2 + $0x48] sm:$0xff]
    %v65 = vld [vmem:[%s2 + $0x50] sm:$0xff]
    %v66 = vld [vmem:[%s2 + $0x58] sm:$0xff]
    %68 = vset.pattern.permute.xlu0 0
    %69 = vperm.xlu0 %68, %v55
    %v70 = vpop.permute.xlu0 %69
    %73 = vset.pattern.permute.xlu0 0
    %74 = vperm.xlu0 %73, %v56
    %v75 = vpop.permute.xlu0 %74
    %78 = vset.pattern.permute.xlu0 0
    %79 = vperm.xlu0 %78, %v57
    %v80 = vpop.permute.xlu0 %79
    %83 = vset.pattern.permute.xlu0 0
    %84 = vperm.xlu0 %83, %v58
    %v85 = vpop.permute.xlu0 %84
    %88 = vset.pattern.permute.xlu0 0
    %89 = vperm.xlu0 %88, %v59
    %v90 = vpop.permute.xlu0 %89
    %93 = vset.pattern.permute.xlu0 0
    %94 = vperm.xlu0 %93, %v60
    %v95 = vpop.permute.xlu0 %94
    %98 = vset.pattern.permute.xlu0 0
    %99 = vperm.xlu0 %98, %v61
    %v100 = vpop.permute.xlu0 %99
    %103 = vset.pattern.permute.xlu0 0
    %104 = vperm.xlu0 %103, %v62
    %v105 = vpop.permute.xlu0 %104
    %108 = vset.pattern.permute.xlu0 0
    %109 = vperm.xlu0 %108, %v63
    %v110 = vpop.permute.xlu0 %109
    %113 = vset.pattern.permute.xlu0 0
    %114 = vperm.xlu0 %113, %v64
    %v115 = vpop.permute.xlu0 %114
    %118 = vset.pattern.permute.xlu0 0
    %119 = vperm.xlu0 %118, %v65
    %v120 = vpop.permute.xlu0 %119
    %123 = vset.pattern.permute.xlu0 0
    %124 = vperm.xlu0 %123, %v66
    %v125 = vpop.permute.xlu0 %124
    %vm127 = vcmask 130048
    %v129 = vsel %vm127, %v43, 0
    %v132 = vsel %vm127, %v44, 0
    %v135 = vsel %vm127, %v45, 0
    %v138 = vsel %vm127, %v46, 0
    %v141 = vsel %vm127, %v47, 0
    %v144 = vsel %vm127, %v48, 0
    %v147 = vsel %vm127, %v49, 0
    %v150 = vsel %vm127, %v50, 0
    %v153 = vsel %vm127, %v51, 0
    %v156 = vsel %vm127, %v52, 0
    %v159 = vsel %vm127, %v53, 0
    %v162 = vsel %vm127, %v54, 0
    %164 = vmatprep.subr.mxu0 0.0
    %165 = vmatpush1.msra.mxu0 %v41
    %166 = vmatprep.subr.mxu0 0.0
    %167 = vmatpush1.msra.mxu0 %v42
    %168 = vmatprep.subr.mxu0 0.0
    %169 = vmatpush1.msra.mxu0 0.0
    %170 = vmatprep.subr.mxu0 0.0
    %171 = vmatpush1.msra.mxu0 0.0
    %172 = vmatprep.subr.mxu0 0.0
    %173 = vmatpush1.msra.mxu0 0.0
    %174 = vmatprep.subr.mxu0 0.0
    %175 = vmatpush1.msra.mxu0 0.0
    %176 = vmatprep.subr.mxu0 0.0
    %177 = vmatpush1.msra.mxu0 0.0
    %178 = vmatprep.subr.mxu0 0.0
    %179 = vmatpush1.msra.mxu0 0.0
    %180 = vmatprep.subr.mxu0 0.0
    %181 = vmatpush1.msra.mxu0 0.0
    %182 = vmatprep.subr.mxu0 0.0
    %183 = vmatpush1.msra.mxu0 0.0
    %184 = vmatprep.subr.mxu0 0.0
    %185 = vmatpush1.msra.mxu0 0.0
    %186 = vmatprep.subr.mxu0 0.0
    %187 = vmatpush1.msra.mxu0 0.0
    %188 = vmatprep.subr.mxu0 0.0
    %189 = vmatpush1.msra.mxu0 0.0
    %190 = vmatprep.subr.mxu0 0.0
    %191 = vmatpush1.msra.mxu0 0.0
    %192 = vmatprep.subr.mxu0 0.0
    %193 = vmatpush1.msra.mxu0 0.0
    %194 = vmatprep.subr.mxu0 0.0
    %195 = vmatpush1.msra.mxu0 0.0
    %196 = vmatprep.subr.mxu0 0.0
    %197 = vmatpush1.msra.mxu0 0.0
    %198 = vmatprep.subr.mxu0 0.0
    %199 = vmatpush1.msra.mxu0 0.0
    %200 = vmatprep.subr.mxu0 0.0
    %201 = vmatpush1.msra.mxu0 0.0
    %202 = vmatprep.subr.mxu0 0.0
    %203 = vmatpush1.msra.mxu0 0.0
    %204 = vmatprep.subr.mxu0 0.0
    %205 = vmatpush1.msra.mxu0 0.0
    %206 = vmatprep.subr.mxu0 0.0
    %207 = vmatpush1.msra.mxu0 0.0
    %208 = vmatprep.subr.mxu0 0.0
    %209 = vmatpush1.msra.mxu0 0.0
    %210 = vmatprep.subr.mxu0 0.0
    %211 = vmatpush1.msra.mxu0 0.0
    %212 = vmatprep.subr.mxu0 0.0
    %213 = vmatpush1.msra.mxu0 0.0
    %214 = vmatprep.subr.mxu0 0.0
    %215 = vmatpush1.msra.mxu0 0.0
    %216 = vmatprep.subr.mxu0 0.0
    %217 = vmatpush1.msra.mxu0 0.0
    %218 = vmatprep.subr.mxu0 0.0
    %219 = vmatpush1.msra.mxu0 0.0
    %220 = vmatprep.subr.mxu0 0.0
    %221 = vmatpush1.msra.mxu0 0.0
    %222 = vmatprep.subr.mxu0 0.0
    %223 = vmatpush1.msra.mxu0 0.0
    %224 = vmatprep.subr.mxu0 0.0
    %225 = vmatpush1.msra.mxu0 0.0
    %226 = vmatprep.subr.mxu0 0.0
    %227 = vmatpush1.msra.mxu0 0.0
    %228 = vmatprep.mubr.f32.mxu0 0.0
    %229 = vmatmul.mubr.f32.gmra.mrb[0].mxu0 %v129
    %v230 = vpop.f32.mrb[0].mxu0
    %v231 = vadd.f32 %v70, %v230
    %v232 = vpop.f32.mrb[0].mxu0
    %233 = vmatprep.mubr.f32.mxu0 0.0
    %234 = vmatmul.mubr.f32.gmra.mrb[0].mxu0 %v132
    %v235 = vpop.f32.mrb[0].mxu0
    %v236 = vadd.f32 %v75, %v235
    %v237 = vpop.f32.mrb[0].mxu0
    %238 = vmatprep.mubr.f32.mxu0 0.0
    %239 = vmatmul.mubr.f32.gmra.mrb[0].mxu0 %v135
    %v240 = vpop.f32.mrb[0].mxu0
    %v241 = vadd.f32 %v80, %v240
    %v242 = vpop.f32.mrb[0].mxu0
    %243 = vmatprep.mubr.f32.mxu0 0.0
    %244 = vmatmul.mubr.f32.gmra.mrb[0].mxu0 %v138
    %v245 = vpop.f32.mrb[0].mxu0
    %v246 = vadd.f32 %v85, %v245
    %v247 = vpop.f32.mrb[0].mxu0
    %248 = vmatprep.mubr.f32.mxu0 0.0
    %249 = vmatmul.mubr.f32.gmra.mrb[0].mxu0 %v141
    %v250 = vpop.f32.mrb[0].mxu0
    %v251 = vadd.f32 %v90, %v250
    %v252 = vpop.f32.mrb[0].mxu0
    %253 = vmatprep.mubr.f32.mxu0 0.0
    %254 = vmatmul.mubr.f32.gmra.mrb[0].mxu0 %v144
    %v255 = vpop.f32.mrb[0].mxu0
    %v256 = vadd.f32 %v95, %v255
    %v257 = vpop.f32.mrb[0].mxu0
    %258 = vmatprep.mubr.f32.mxu0 0.0
    %259 = vmatmul.mubr.f32.gmra.mrb[0].mxu0 %v147
    %v260 = vpop.f32.mrb[0].mxu0
    %v261 = vadd.f32 %v100, %v260
    %v262 = vpop.f32.mrb[0].mxu0
    %263 = vmatprep.mubr.f32.mxu0 0.0
    %264 = vmatmul.mubr.f32.gmra.mrb[0].mxu0 %v150
    %v265 = vpop.f32.mrb[0].mxu0
    %v266 = vadd.f32 %v105, %v265
    %v267 = vpop.f32.mrb[0].mxu0
    %268 = vmatprep.mubr.f32.mxu0 0.0
    %269 = vmatmul.mubr.f32.gmra.mrb[0].mxu0 %v153
    %v270 = vpop.f32.mrb[0].mxu0
    %v271 = vadd.f32 %v110, %v270
    %v272 = vpop.f32.mrb[0].mxu0
    %273 = vmatprep.mubr.f32.mxu0 0.0
    %274 = vmatmul.mubr.f32.gmra.mrb[0].mxu0 %v156
    %v275 = vpop.f32.mrb[0].mxu0
    %v276 = vadd.f32 %v115, %v275
    %v277 = vpop.f32.mrb[0].mxu0
    %278 = vmatprep.mubr.f32.mxu0 0.0
    %279 = vmatmul.mubr.f32.gmra.mrb[0].mxu0 %v159
    %v280 = vpop.f32.mrb[0].mxu0
    %v281 = vadd.f32 %v120, %v280
    %v282 = vpop.f32.mrb[0].mxu0
    %283 = vmatprep.mubr.f32.mxu0 0.0
    %284 = vmatmul.mubr.f32.gmra.mrb[0].mxu0 %v162
    %v285 = vpop.f32.mrb[0].mxu0
    %v286 = vadd.f32 %v125, %v285
    %v287 = vpop.f32.mrb[0].mxu0
    %288 = vdwg.mxu0
    %v289 = vmax.f32 %v231, 0.0
    %v290 = vmax.f32 %v236, 0.0
    %v291 = vmax.f32 %v241, 0.0
    %v292 = vmax.f32 %v246, 0.0
    %v293 = vmax.f32 %v251, 0.0
    %v294 = vmax.f32 %v256, 0.0
    %v295 = vmax.f32 %v261, 0.0
    %v296 = vmax.f32 %v266, 0.0
    %v297 = vmax.f32 %v271, 0.0
    %v298 = vmax.f32 %v276, 0.0
    %v299 = vmax.f32 %v281, 0.0
    %v300 = vmax.f32 %v286, 0.0
    %v301 = vld [vmem:[%s3] sm:$0xff]
    %v302 = vld [vmem:[%s3 + $0x8] sm:$0xff]
    %v303 = vld [vmem:[%s3 + $0x10] sm:$0xff]
    %v304 = vld [vmem:[%s3 + $0x18] sm:$0xff]
    %v305 = vld [vmem:[%s4] sm:$0xff]
    %v306 = vld [vmem:[%s4 + $0x8] sm:$0xff]
    %v307 = vld [vmem:[%s4 + $0x10] sm:$0xff]
    %v308 = vld [vmem:[%s4 + $0x18] sm:$0xff]
    %310 = vset.pattern.permute.xlu0 0
    %311 = vperm.xlu0 %310, %v305
    %v312 = vpop.permute.xlu0 %311
    %315 = vset.pattern.permute.xlu0 0
    %316 = vperm.xlu0 %315, %v306
    %v317 = vpop.permute.xlu0 %316
    %320 = vset.pattern.permute.xlu0 0
    %321 = vperm.xlu0 %320, %v307
    %v322 = vpop.permute.xlu0 %321
    %325 = vset.pattern.permute.xlu0 0
    %326 = vperm.xlu0 %325, %v308
    %v327 = vpop.permute.xlu0 %326
    %vm329 = vcmask 785408
    %v331 = vsel %vm329, %v301, 0
    %v334 = vsel %vm329, %v302, 0
    %v337 = vsel %vm329, %v303, 0
    %v340 = vsel %vm329, %v304, 0
    %342 = vmatprep.subr.mxu0 0.0
    %343 = vmatpush1.msra.mxu0 %v289
    %344 = vmatprep.subr.mxu0 0.0
    %345 = vmatpush1.msra.mxu0 %v290
    %346 = vmatprep.subr.mxu0 0.0
    %347 = vmatpush1.msra.mxu0 %v291
    %348 = vmatprep.subr.mxu0 0.0
    %349 = vmatpush1.msra.mxu0 %v292
    %350 = vmatprep.subr.mxu0 0.0
    %351 = vmatpush1.msra.mxu0 %v293
    %352 = vmatprep.subr.mxu0 0.0
    %353 = vmatpush1.msra.mxu0 %v294
    %354 = vmatprep.subr.mxu0 0.0
    %355 = vmatpush1.msra.mxu0 %v295
    %356 = vmatprep.subr.mxu0 0.0
    %357 = vmatpush1.msra.mxu0 %v296
    %358 = vmatprep.subr.mxu0 0.0
    %359 = vmatpush1.msra.mxu0 %v297
    %360 = vmatprep.subr.mxu0 0.0
    %361 = vmatpush1.msra.mxu0 %v298
    %362 = vmatprep.subr.mxu0 0.0
    %363 = vmatpush1.msra.mxu0 %v299
    %364 = vmatprep.subr.mxu0 0.0
    %365 = vmatpush1.msra.mxu0 %v300
    %366 = vmatprep.subr.mxu0 0.0
    %367 = vmatpush1.msra.mxu0 0.0
    %368 = vmatprep.subr.mxu0 0.0
    %369 = vmatpush1.msra.mxu0 0.0
    %370 = vmatprep.subr.mxu0 0.0
    %371 = vmatpush1.msra.mxu0 0.0
    %372 = vmatprep.subr.mxu0 0.0
    %373 = vmatpush1.msra.mxu0 0.0
    %374 = vmatprep.subr.mxu0 0.0
    %375 = vmatpush1.msra.mxu0 0.0
    %376 = vmatprep.subr.mxu0 0.0
    %377 = vmatpush1.msra.mxu0 0.0
    %378 = vmatprep.subr.mxu0 0.0
    %379 = vmatpush1.msra.mxu0 0.0
    %380 = vmatprep.subr.mxu0 0.0
    %381 = vmatpush1.msra.mxu0 0.0
    %382 = vmatprep.subr.mxu0 0.0
    %383 = vmatpush1.msra.mxu0 0.0
    %384 = vmatprep.subr.mxu0 0.0
    %385 = vmatpush1.msra.mxu0 0.0
    %386 = vmatprep.subr.mxu0 0.0
    %387 = vmatpush1.msra.mxu0 0.0
    %388 = vmatprep.subr.mxu0 0.0
    %389 = vmatpush1.msra.mxu0 0.0
    %390 = vmatprep.subr.mxu0 0.0
    %391 = vmatpush1.msra.mxu0 0.0
    %392 = vmatprep.subr.mxu0 0.0
    %393 = vmatpush1.msra.mxu0 0.0
    %394 = vmatprep.subr.mxu0 0.0
    %395 = vmatpush1.msra.mxu0 0.0
    %396 = vmatprep.subr.mxu0 0.0
    %397 = vmatpush1.msra.mxu0 0.0
    %398 = vmatprep.subr.mxu0 0.0
    %399 = vmatpush1.msra.mxu0 0.0
    %400 = vmatprep.subr.mxu0 0.0
    %401 = vmatpush1.msra.mxu0 0.0
    %402 = vmatprep.subr.mxu0 0.0
    %403 = vmatpush1.msra.mxu0 0.0
    %404 = vmatprep.subr.mxu0 0.0
    %405 = vmatpush1.msra.mxu0 0.0
    %406 = vmatprep.mubr.f32.mxu0 0.0
    %407 = vmatmul.mubr.f32.gmra.mrb[0].mxu0 %v331
    %v408 = vpop.f32.mrb[0].mxu0
    %v409 = vadd.f32 %v312, %v408
    %v410 = vpop.f32.mrb[0].mxu0
    %411 = vmatprep.mubr.f32.mxu0 0.0
    %412 = vmatmul.mubr.f32.gmra.mrb[0].mxu0 %v334
    %v413 = vpop.f32.mrb[0].mxu0
    %v414 = vadd.f32 %v317, %v413
    %v415 = vpop.f32.mrb[0].mxu0
    %416 = vmatprep.mubr.f32.mxu0 0.0
    %417 = vmatmul.mubr.f32.gmra.mrb[0].mxu0 %v337
    %v418 = vpop.f32.mrb[0].mxu0
    %v419 = vadd.f32 %v322, %v418
    %v420 = vpop.f32.mrb[0].mxu0
    %421 = vmatprep.mubr.f32.mxu0 0.0
    %422 = vmatmul.mubr.f32.gmra.mrb[0].mxu0 %v340
    %v423 = vpop.f32.mrb[0].mxu0
    %v424 = vadd.f32 %v327, %v423
    %v425 = vpop.f32.mrb[0].mxu0
    %426 = vdwg.mxu0
    %v427 = vmax.f32 %v409, 0.0
    %v428 = vmax.f32 %v414, 0.0
    %v429 = vmax.f32 %v419, 0.0
    %v430 = vmax.f32 %v424, 0.0
    %v431 = vld [vmem:[%s5] sm:$0xff]
    %v432 = vld [vmem:[%s5 + $0x8] sm:$0xff]
    %v433 = vld [vmem:[%s5 + $0x10] sm:$0xff]
    %v434 = vld [vmem:[%s5 + $0x18] sm:$0xff]
    %v435 = vld [vmem:[%s6] sm:$0xff]
    %v436 = vld [vmem:[%s6 + $0x8] sm:$0xff]
    %v437 = vld [vmem:[%s6 + $0x10] sm:$0xff]
    %v438 = vld [vmem:[%s6 + $0x18] sm:$0xff]
    %440 = vset.pattern.permute.xlu0 0
    %441 = vperm.xlu0 %440, %v435
    %v442 = vpop.permute.xlu0 %441
    %445 = vset.pattern.permute.xlu0 0
    %446 = vperm.xlu0 %445, %v436
    %v447 = vpop.permute.xlu0 %446
    %450 = vset.pattern.permute.xlu0 0
    %451 = vperm.xlu0 %450, %v437
    %v452 = vpop.permute.xlu0 %451
    %455 = vset.pattern.permute.xlu0 0
    %456 = vperm.xlu0 %455, %v438
    %v457 = vpop.permute.xlu0 %456
    %vm459 = vcmask 261120
    %v461 = vsel %vm459, %v431, 0
    %v464 = vsel %vm459, %v432, 0
    %v467 = vsel %vm459, %v433, 0
    %v470 = vsel %vm459, %v434, 0
    %472 = vmatprep.subr.mxu0 0.0
    %473 = vmatpush1.msra.mxu0 %v427
    %474 = vmatprep.subr.mxu0 0.0
    %475 = vmatpush1.msra.mxu0 %v428
    %476 = vmatprep.subr.mxu0 0.0
    %477 = vmatpush1.msra.mxu0 %v429
    %478 = vmatprep.subr.mxu0 0.0
    %479 = vmatpush1.msra.mxu0 %v430
    %480 = vmatprep.subr.mxu0 0.0
    %481 = vmatpush1.msra.mxu0 0.0
    %482 = vmatprep.subr.mxu0 0.0
    %483 = vmatpush1.msra.mxu0 0.0
    %484 = vmatprep.subr.mxu0 0.0
    %485 = vmatpush1.msra.mxu0 0.0
    %486 = vmatprep.subr.mxu0 0.0
    %487 = vmatpush1.msra.mxu0 0.0
    %488 = vmatprep.subr.mxu0 0.0
    %489 = vmatpush1.msra.mxu0 0.0
    %490 = vmatprep.subr.mxu0 0.0
    %491 = vmatpush1.msra.mxu0 0.0
    %492 = vmatprep.subr.mxu0 0.0
    %493 = vmatpush1.msra.mxu0 0.0
    %494 = vmatprep.subr.mxu0 0.0
    %495 = vmatpush1.msra.mxu0 0.0
    %496 = vmatprep.subr.mxu0 0.0
    %497 = vmatpush1.msra.mxu0 0.0
    %498 = vmatprep.subr.mxu0 0.0
    %499 = vmatpush1.msra.mxu0 0.0
    %500 = vmatprep.subr.mxu0 0.0
    %501 = vmatpush1.msra.mxu0 0.0
    %502 = vmatprep.subr.mxu0 0.0
    %503 = vmatpush1.msra.mxu0 0.0
    %504 = vmatprep.subr.mxu0 0.0
    %505 = vmatpush1.msra.mxu0 0.0
    %506 = vmatprep.subr.mxu0 0.0
    %507 = vmatpush1.msra.mxu0 0.0
    %508 = vmatprep.subr.mxu0 0.0
    %509 = vmatpush1.msra.mxu0 0.0
    %510 = vmatprep.subr.mxu0 0.0
    %511 = vmatpush1.msra.mxu0 0.0
    %512 = vmatprep.subr.mxu0 0.0
    %513 = vmatpush1.msra.mxu0 0.0
    %514 = vmatprep.subr.mxu0 0.0
    %515 = vmatpush1.msra.mxu0 0.0
    %516 = vmatprep.subr.mxu0 0.0
    %517 = vmatpush1.msra.mxu0 0.0
    %518 = vmatprep.subr.mxu0 0.0
    %519 = vmatpush1.msra.mxu0 0.0
    %520 = vmatprep.subr.mxu0 0.0
    %521 = vmatpush1.msra.mxu0 0.0
    %522 = vmatprep.subr.mxu0 0.0
    %523 = vmatpush1.msra.mxu0 0.0
    %524 = vmatprep.subr.mxu0 0.0
    %525 = vmatpush1.msra.mxu0 0.0
    %526 = vmatprep.subr.mxu0 0.0
    %527 = vmatpush1.msra.mxu0 0.0
    %528 = vmatprep.subr.mxu0 0.0
    %529 = vmatpush1.msra.mxu0 0.0
    %530 = vmatprep.subr.mxu0 0.0
    %531 = vmatpush1.msra.mxu0 0.0
    %532 = vmatprep.subr.mxu0 0.0
    %533 = vmatpush1.msra.mxu0 0.0
    %534 = vmatprep.subr.mxu0 0.0
    %535 = vmatpush1.msra.mxu0 0.0
    %536 = vmatprep.mubr.f32.mxu0 0.0
    %537 = vmatmul.mubr.f32.gmra.mrb[0].mxu0 %v461
    %v538 = vpop.f32.mrb[0].mxu0
    %v539 = vadd.f32 %v442, %v538
    %v540 = vpop.f32.mrb[0].mxu0
    %541 = vmatprep.mubr.f32.mxu0 0.0
    %542 = vmatmul.mubr.f32.gmra.mrb[0].mxu0 %v464
    %v543 = vpop.f32.mrb[0].mxu0
    %v544 = vadd.f32 %v447, %v543
    %v545 = vpop.f32.mrb[0].mxu0
    %546 = vmatprep.mubr.f32.mxu0 0.0
    %547 = vmatmul.mubr.f32.gmra.mrb[0].mxu0 %v467
    %v548 = vpop.f32.mrb[0].mxu0
    %v549 = vadd.f32 %v452, %v548
    %v550 = vpop.f32.mrb[0].mxu0
    %551 = vmatprep.mubr.f32.mxu0 0.0
    %552 = vmatmul.mubr.f32.gmra.mrb[0].mxu0 %v470
    %v553 = vpop.f32.mrb[0].mxu0
    %v554 = vadd.f32 %v457, %v553
    %v555 = vpop.f32.mrb[0].mxu0
    %556 = vdwg.mxu0
    %v557 = vmax.f32 %v539, 0.0
    %v558 = vmax.f32 %v544, 0.0
    %v559 = vmax.f32 %v549, 0.0
    %v560 = vmax.f32 %v554, 0.0
    %v561 = vld [vmem:[%s7] sm:$0xff]
    %v562 = vld [vmem:[%s7 + $0x8] sm:$0xff]
    %v563 = vld [vmem:[%s8] sm:$0xff]
    %v564 = vld [vmem:[%s8 + $0x8] sm:$0xff]
    %566 = vset.pattern.permute.xlu0 0
    %567 = vperm.xlu0 %566, %v563
    %v568 = vpop.permute.xlu0 %567
    %571 = vset.pattern.permute.xlu0 0
    %572 = vperm.xlu0 %571, %v564
    %v573 = vpop.permute.xlu0 %572
    %v576 = vsel %vm459, %v561, 0
    %v579 = vsel %vm459, %v562, 0
    %581 = vmatprep.subr.mxu0 0.0
    %582 = vmatpush1.msra.mxu0 %v557
    %583 = vmatprep.subr.mxu0 0.0
    %584 = vmatpush1.msra.mxu0 %v558
    %585 = vmatprep.subr.mxu0 0.0
    %586 = vmatpush1.msra.mxu0 %v559
    %587 = vmatprep.subr.mxu0 0.0
    %588 = vmatpush1.msra.mxu0 %v560
    %589 = vmatprep.subr.mxu0 0.0
    %590 = vmatpush1.msra.mxu0 0.0
    %591 = vmatprep.subr.mxu0 0.0
    %592 = vmatpush1.msra.mxu0 0.0
    %593 = vmatprep.subr.mxu0 0.0
    %594 = vmatpush1.msra.mxu0 0.0
    %595 = vmatprep.subr.mxu0 0.0
    %596 = vmatpush1.msra.mxu0 0.0
    %597 = vmatprep.subr.mxu0 0.0
    %598 = vmatpush1.msra.mxu0 0.0
    %599 = vmatprep.subr.mxu0 0.0
    %600 = vmatpush1.msra.mxu0 0.0
    %601 = vmatprep.subr.mxu0 0.0
    %602 = vmatpush1.msra.mxu0 0.0
    %603 = vmatprep.subr.mxu0 0.0
    %604 = vmatpush1.msra.mxu0 0.0
    %605 = vmatprep.subr.mxu0 0.0
    %606 = vmatpush1.msra.mxu0 0.0
    %607 = vmatprep.subr.mxu0 0.0
    %608 = vmatpush1.msra.mxu0 0.0
    %609 = vmatprep.subr.mxu0 0.0
    %610 = vmatpush1.msra.mxu0 0.0
    %611 = vmatprep.subr.mxu0 0.0
    %612 = vmatpush1.msra.mxu0 0.0
    %613 = vmatprep.subr.mxu0 0.0
    %614 = vmatpush1.msra.mxu0 0.0
    %615 = vmatprep.subr.mxu0 0.0
    %616 = vmatpush1.msra.mxu0 0.0
    %617 = vmatprep.subr.mxu0 0.0
    %618 = vmatpush1.msra.mxu0 0.0
    %619 = vmatprep.subr.mxu0 0.0
    %620 = vmatpush1.msra.mxu0 0.0
    %621 = vmatprep.subr.mxu0 0.0
    %622 = vmatpush1.msra.mxu0 0.0
    %623 = vmatprep.subr.mxu0 0.0
    %624 = vmatpush1.msra.mxu0 0.0
    %625 = vmatprep.subr.mxu0 0.0
    %626 = vmatpush1.msra.mxu0 0.0
    %627 = vmatprep.subr.mxu0 0.0
    %628 = vmatpush1.msra.mxu0 0.0
    %629 = vmatprep.subr.mxu0 0.0
    %630 = vmatpush1.msra.mxu0 0.0
    %631 = vmatprep.subr.mxu0 0.0
    %632 = vmatpush1.msra.mxu0 0.0
    %633 = vmatprep.subr.mxu0 0.0
    %634 = vmatpush1.msra.mxu0 0.0
    %635 = vmatprep.subr.mxu0 0.0
    %636 = vmatpush1.msra.mxu0 0.0
    %637 = vmatprep.subr.mxu0 0.0
    %638 = vmatpush1.msra.mxu0 0.0
    %639 = vmatprep.subr.mxu0 0.0
    %640 = vmatpush1.msra.mxu0 0.0
    %641 = vmatprep.subr.mxu0 0.0
    %642 = vmatpush1.msra.mxu0 0.0
    %643 = vmatprep.subr.mxu0 0.0
    %644 = vmatpush1.msra.mxu0 0.0
    %645 = vmatprep.mubr.f32.mxu0 0.0
    %646 = vmatmul.mubr.f32.gmra.mrb[0].mxu0 %v576
    %v647 = vpop.f32.mrb[0].mxu0
    %v648 = vadd.f32 %v568, %v647
    %v649 = vpop.f32.mrb[0].mxu0
    %650 = vmatprep.mubr.f32.mxu0 0.0
    %651 = vmatmul.mubr.f32.gmra.mrb[0].mxu0 %v579
    %v652 = vpop.f32.mrb[0].mxu0
    %v653 = vadd.f32 %v573, %v652
    %v654 = vpop.f32.mrb[0].mxu0
    %655 = vdwg.mxu0
    %v656 = vmax.f32 %v648, 0.0
    %v657 = vmax.f32 %v653, 0.0
    %v658 = vld [vmem:[%s9] sm:$0x1]
    %v659 = vld [vmem:[#allocation2] sm:$0x1]
    %661 = vset.pattern.permute.xlu0 0
    %662 = vperm.xlu0 %661, %v659
    %v663 = vpop.permute.xlu0 %662
    %v665 = vlaneseq
    %v666 = vshrl.u32 %v665, 7
    %v667 = vsub.s32 0, %v666
    %v668 = vrot.slane %v663, %v667
    %v670 = vsel %vm127, %v658, 0
    %672 = vmatprep.subr.mxu0 0.0
    %673 = vmatpush1.msra.mxu0 %v656
    %674 = vmatprep.subr.mxu0 0.0
    %675 = vmatpush1.msra.mxu0 %v657
    %676 = vmatprep.subr.mxu0 0.0
    %677 = vmatpush1.msra.mxu0 0.0
    %678 = vmatprep.subr.mxu0 0.0
    %679 = vmatpush1.msra.mxu0 0.0
    %680 = vmatprep.subr.mxu0 0.0
    %681 = vmatpush1.msra.mxu0 0.0
    %682 = vmatprep.subr.mxu0 0.0
    %683 = vmatpush1.msra.mxu0 0.0
    %684 = vmatprep.subr.mxu0 0.0
    %685 = vmatpush1.msra.mxu0 0.0
    %686 = vmatprep.subr.mxu0 0.0
    %687 = vmatpush1.msra.mxu0 0.0
    %688 = vmatprep.subr.mxu0 0.0
    %689 = vmatpush1.msra.mxu0 0.0
    %690 = vmatprep.subr.mxu0 0.0
    %691 = vmatpush1.msra.mxu0 0.0
    %692 = vmatprep.subr.mxu0 0.0
    %693 = vmatpush1.msra.mxu0 0.0
    %694 = vmatprep.subr.mxu0 0.0
    %695 = vmatpush1.msra.mxu0 0.0
    %696 = vmatprep.subr.mxu0 0.0
    %697 = vmatpush1.msra.mxu0 0.0
    %698 = vmatprep.subr.mxu0 0.0
    %699 = vmatpush1.msra.mxu0 0.0
    %700 = vmatprep.subr.mxu0 0.0
    %701 = vmatpush1.msra.mxu0 0.0
    %702 = vmatprep.subr.mxu0 0.0
    %703 = vmatpush1.msra.mxu0 0.0
    %704 = vmatprep.subr.mxu0 0.0
    %705 = vmatpush1.msra.mxu0 0.0
    %706 = vmatprep.subr.mxu0 0.0
    %707 = vmatpush1.msra.mxu0 0.0
    %708 = vmatprep.subr.mxu0 0.0
    %709 = vmatpush1.msra.mxu0 0.0
    %710 = vmatprep.subr.mxu0 0.0
    %711 = vmatpush1.msra.mxu0 0.0
    %712 = vmatprep.subr.mxu0 0.0
    %713 = vmatpush1.msra.mxu0 0.0
    %714 = vmatprep.subr.mxu0 0.0
    %715 = vmatpush1.msra.mxu0 0.0
    %716 = vmatprep.subr.mxu0 0.0
    %717 = vmatpush1.msra.mxu0 0.0
    %718 = vmatprep.subr.mxu0 0.0
    %719 = vmatpush1.msra.mxu0 0.0
    %720 = vmatprep.subr.mxu0 0.0
    %721 = vmatpush1.msra.mxu0 0.0
    %722 = vmatprep.subr.mxu0 0.0
    %723 = vmatpush1.msra.mxu0 0.0
    %724 = vmatprep.subr.mxu0 0.0
    %725 = vmatpush1.msra.mxu0 0.0
    %726 = vmatprep.subr.mxu0 0.0
    %727 = vmatpush1.msra.mxu0 0.0
    %728 = vmatprep.subr.mxu0 0.0
    %729 = vmatpush1.msra.mxu0 0.0
    %730 = vmatprep.subr.mxu0 0.0
    %731 = vmatpush1.msra.mxu0 0.0
    %732 = vmatprep.subr.mxu0 0.0
    %733 = vmatpush1.msra.mxu0 0.0
    %734 = vmatprep.subr.mxu0 0.0
    %735 = vmatpush1.msra.mxu0 0.0
    %736 = vmatprep.mubr.f32.mxu0 0.0
    %737 = vmatmul.mubr.f32.gmra.mrb[0].mxu0 %v670
    %v738 = vpop.f32.mrb[0].mxu0
    %v739 = vadd.f32 %v668, %v738
    %v740 = vpop.f32.mrb[0].mxu0
    %741 = vdwg.mxu0
    %742 = vst [vmem:[#allocation3] sm:$0x1] %v739
    // Predicated region
    $region46: #{tpu_custom_call.1} parent=1 // pred_check
      _
    $region47: #{tpu_custom_call.1} parent=1 // pred_check_branch
      %744 = sbr.rel (0) target = $region49
    $region48: #{tpu_custom_call.1} parent=1 // pred_region
      %s746 = ssub.s32 16, 16
      %747 = vsyncadd [#allocation4], %s746
      %s749 = sshll.u32 [#allocation3], 4
      %s750 = int_to_ptr.vmem [resolvable:$true] %s749
      %752 = dma.vmem_to_hbm [thread:$0]  %s750, 16, %s11, [#allocation4]
    $region49: #{tpu_custom_call.1} parent=1 // pred_fallthru
      _
    // Predicated region
    $region50: #{tpu_custom_call.1} parent=1 // pred_check
      _
    $region51: #{tpu_custom_call.1} parent=1 // pred_check_branch
      %754 = sbr.rel (0) target = $region53
    $region52: #{tpu_custom_call.1} parent=1 // pred_region
      %755 = dma.done [#allocation4], 16
    $region53: #{tpu_custom_call.1} parent=1 // pred_fallthru
      _
    %756 = vsyncpa [#allocation4], 1

</llo_original>
